<compile_context>
chip_gen: v7x
topology: tpu7x:2x2x1
jax: 0.10.0
libtpu: 0.0.40
codegen_flags: <defaults>
</compile_context>

<pallas_src>
import jax
import jax.numpy as jnp
from jax.experimental import pallas as pl
from jax.experimental.pallas import tpu as pltpu

_LANES = 128
_SUBLANES = 8


def _mse_partial_kernel(pred_ref, target_ref, partial_ref):
    # pred_ref/target_ref: (TILE_ROWS, 128) block of the flattened inputs.
    d = pred_ref[...].astype(jnp.float32) - target_ref[...].astype(jnp.float32)
    sq = d * d
    tile_rows = sq.shape[0]
    # Fold rows onto the sublane axis and reduce along the leading axis only:
    # this lowers to elementwise VPU adds.  The single cross-lane/sublane
    # reduction is deferred to the wrapper (once per call, not per tile).
    partial_ref[...] = jnp.sum(
        sq.reshape(tile_rows // _SUBLANES, _SUBLANES, _LANES), axis=0
    )


def _round_up(x, m):
    return ((x + m - 1) // m) * m


def mse_loss(pred, target, reduction="mean", tile_rows=1024):
    """Pallas TPU equivalent of nn.MSELoss(reduction='mean'|'sum')(pred, target)."""
    assert pred.shape == target.shape, (pred.shape, target.shape)
    total = int(pred.size)

    # Flatten to a lane-dense (rows, 128) layout; zero-pad the tail (padded
    # positions contribute (0 - 0)^2 = 0 to the sum).
    rows = pl.cdiv(total, _LANES)
    tile = _round_up(min(tile_rows, _round_up(rows, _SUBLANES)), _SUBLANES)
    rows_padded = _round_up(rows, tile)
    padded_elems = rows_padded * _LANES
    num_blocks = rows_padded // tile

    def _flatten_pad(x):
        flat = x.reshape(-1)
        flat = jnp.pad(flat, (0, padded_elems - total))
        return flat.reshape(rows_padded, _LANES)

    p2 = _flatten_pad(pred)
    t2 = _flatten_pad(target)

    partials = pl.pallas_call(
        _mse_partial_kernel,
        out_shape=jax.ShapeDtypeStruct((num_blocks * _SUBLANES, _LANES), jnp.float32),
        grid=(num_blocks,),
        in_specs=[
            pl.BlockSpec((tile, _LANES), lambda i: (i, 0)),
            pl.BlockSpec((tile, _LANES), lambda i: (i, 0)),
        ],
        out_specs=pl.BlockSpec((_SUBLANES, _LANES), lambda i: (i, 0)),
        compiler_params=pltpu.CompilerParams(
            dimension_semantics=("parallel",),
        ),
    )(p2, t2)

    s = jnp.sum(partials)  # tiny final reduction in XLA (free)
    if reduction == "mean":
        return s / jnp.float32(total)
    elif reduction == "sum":
        return s
    else:
        # TODO(synk): reduction='none' (per-element output) not implemented.
        raise ValueError(f"unsupported reduction: {reduction}")


if __name__ == "__main__":
    key = jax.random.PRNGKey(0)
    k1, k2, k3, k4 = jax.random.split(key, 4)

    # 2-D (batch, features) case, matching typical weightedSHAP usage.
    pred_a = jax.random.normal(k1, (8, 32), dtype=jnp.float32)
    target_a = jax.random.normal(k2, (8, 32), dtype=jnp.float32)
    loss_a = mse_loss(pred_a, target_a)
    jax.block_until_ready(loss_a)
    ref_a = jnp.mean((pred_a - target_a) ** 2)
    assert jnp.allclose(loss_a, ref_a, rtol=1e-5, atol=1e-6), (loss_a, ref_a)

    # 4-D case to show MSE works for arbitrary shapes (elementwise op).
    pred_b = jax.random.normal(k3, (2, 4, 16, 16), dtype=jnp.float32)
    target_b = jax.random.normal(k4, (2, 4, 16, 16), dtype=jnp.float32)
    loss_b = mse_loss(pred_b, target_b)
    jax.block_until_ready(loss_b)
    ref_b = jnp.mean((pred_b - target_b) ** 2)
    assert jnp.allclose(loss_b, ref_b, rtol=1e-5, atol=1e-6), (loss_b, ref_b)

    print("KERNEL_OK")
</pallas_src>

<mosaic_0001>
module attributes {stable_mosaic.version = 11 : i64} {
  func.func @_mse_partial_kernel(%arg0: i32, %arg1: memref<8x128xf32, #tpu.memory_space<vmem>>, %arg2: memref<8x128xf32, #tpu.memory_space<vmem>>, %arg3: memref<8x128xf32, #tpu.memory_space<vmem>>) attributes {dimension_semantics = [#tpu.dimension_semantics<parallel>], iteration_bounds = array<i64: 1>, scalar_prefetch = 0 : i64, scratch_operands = 0 : i64, tpu.core_type = #tpu.core_type<tc>, window_params = [{transform_indices = @transform_0, window_bounds = array<i64: 8, 128>}, {transform_indices = @transform_1, window_bounds = array<i64: 8, 128>}, {transform_indices = @transform_2, window_bounds = array<i64: 8, 128>}]} {
    %c0 = arith.constant 0 : index
    %c0_0 = arith.constant 0 : index
    %0 = vector.load %arg1[%c0, %c0_0] : memref<8x128xf32, #tpu.memory_space<vmem>>, vector<8x128xf32>
    %c0_1 = arith.constant 0 : index
    %c0_2 = arith.constant 0 : index
    %1 = vector.load %arg2[%c0_1, %c0_2] : memref<8x128xf32, #tpu.memory_space<vmem>>, vector<8x128xf32>
    %2 = arith.subf %0, %1 : vector<8x128xf32>
    %3 = arith.mulf %2, %2 : vector<8x128xf32>
    %4 = vector.shape_cast %3 : vector<8x128xf32> to vector<1x8x128xf32>
    %cst = arith.constant dense<0.000000e+00> : vector<8x128xf32>
    %5 = vector.multi_reduction <add>, %4, %cst [0] : vector<1x8x128xf32> to vector<8x128xf32>
    %c0_3 = arith.constant 0 : index
    %c0_4 = arith.constant 0 : index
    %6 = vector.load %arg3[%c0_3, %c0_4] : memref<8x128xf32, #tpu.memory_space<vmem>>, vector<8x128xf32>
    tpu.vector_store %arg3[%c0_3, %c0_4], %5 {strides = array<i32>} : memref<8x128xf32, #tpu.memory_space<vmem>>, vector<8x128xf32>,
    return
  }
  func.func @transform_0(%arg0: i32) -> (i32, i32) {
    %c0_i32 = arith.constant 0 : i32
    %c0_i32_0 = arith.constant 0 : i32
    return %arg0, %c0_i32 : i32, i32
  }
  func.func @transform_1(%arg0: i32) -> (i32, i32) {
    %c0_i32 = arith.constant 0 : i32
    %c0_i32_0 = arith.constant 0 : i32
    return %arg0, %c0_i32 : i32, i32
  }
  func.func @transform_2(%arg0: i32) -> (i32, i32) {
    %c0_i32 = arith.constant 0 : i32
    %c0_i32_0 = arith.constant 0 : i32
    return %arg0, %c0_i32 : i32, i32
  }
}

</mosaic_0001>

<llo_original>
// kernel: tpu_custom_call.1
$region0: #{tpu_custom_call.1}
  #allocation0 [shape = 'u32[]', space=smem, size = 0x4, offset = 0x4, fixed_abs, tag = 'smem constant byte address 0x4 - core index']
  #allocation1 [shape = 'u32[144,128]{1,0:T(1,128)}', space=vmem, size = 0x12000, scoped, tag = 'internal scratch']
  %s0 = inlined_call_operand.hbm [shape: f32[8,128], index: 0, kind: input, shape index: {}]
  %s1 = inlined_call_operand.hbm [shape: f32[8,128], index: 1, kind: input, shape index: {}]
  %s2 = inlined_call_operand.hbm [shape: f32[8,128], index: 2, kind: output, shape index: {}]
  %s3 = sld [smem:[#allocation0]]
  $region26: #{tpu_custom_call.1} parent=0
    _
  %s5 = ssub.s32 1, %s3
  %s6 = scalar_select 0, %s5, %s3
  $region1: #{tpu_custom_call.1} parent=0
    #allocation2 [shape = 'u8[4096]{0}', space=vmem, size = 0x1000, scoped, tag = 'input window, operand 0, single buffered']
    #allocation3 [shape = 's32[1]{0}', space=sflag, size = 0x4, scoped, tag = 'scoped memory for tpu_custom_call.1']
    #allocation4 [shape = 's32[1]{0}', space=sflag, size = 0x4, scoped, tag = 'scoped memory for tpu_custom_call.1']
    #allocation5 [shape = 'u8[4096]{0}', space=vmem, size = 0x1000, scoped, tag = 'input window, operand 1, single buffered']
    #allocation6 [shape = 's32[1]{0}', space=sflag, size = 0x4, scoped, tag = 'scoped memory for tpu_custom_call.1']
    #allocation7 [shape = 'u8[4096]{0}', space=vmem, size = 0x1000, scoped, tag = 'output window, operand 0, single buffered']
    %7 = vsyncpa [#allocation3], 0
    %8 = vsyncpa [#allocation6], 0
    %9 = vsyncpa [#allocation4], 0
    // Predicated region
    $region2: #{tpu_custom_call.1} parent=1 // pred_check
      _
    $region3: #{tpu_custom_call.1} parent=1 // pred_check_branch
      %11 = sbr.rel (0) target = $region5
    $region4: #{tpu_custom_call.1} parent=1 // pred_region
      %s13 = ssub.s32 128, 128
      %14 = vsyncadd [#allocation3], %s13
      %s16 = sshll.u32 [#allocation2], 4
      %s17 = int_to_ptr.vmem [resolvable:$true] %s16
      %19 = dma.hbm_to_vmem [thread:$0]  %s0, 128, %s17, [#allocation3]
    $region5: #{tpu_custom_call.1} parent=1 // pred_fallthru
      _
    // Predicated region
    $region6: #{tpu_custom_call.1} parent=1 // pred_check
      _
    $region7: #{tpu_custom_call.1} parent=1 // pred_check_branch
      %21 = sbr.rel (0) target = $region9
    $region8: #{tpu_custom_call.1} parent=1 // pred_region
      %s23 = ssub.s32 128, 128
      %24 = vsyncadd [#allocation6], %s23
      %s26 = sshll.u32 [#allocation5], 4
      %s27 = int_to_ptr.vmem [resolvable:$true] %s26
      %29 = dma.hbm_to_vmem [thread:$0]  %s1, 128, %s27, [#allocation6]
    $region9: #{tpu_custom_call.1} parent=1 // pred_fallthru
      _
    // Predicated region
    $region10: #{tpu_custom_call.1} parent=1 // pred_check
      _
    $region11: #{tpu_custom_call.1} parent=1 // pred_check_branch
      %31 = sbr.rel (0) target = $region13
    $region12: #{tpu_custom_call.1} parent=1 // pred_region
      %32 = dma.done [#allocation3], 128
    $region13: #{tpu_custom_call.1} parent=1 // pred_fallthru
      _
    // Predicated region
    $region14: #{tpu_custom_call.1} parent=1 // pred_check
      _
    $region15: #{tpu_custom_call.1} parent=1 // pred_check_branch
      %34 = sbr.rel (0) target = $region17
    $region16: #{tpu_custom_call.1} parent=1 // pred_region
      %35 = dma.done [#allocation6], 128
    $region17: #{tpu_custom_call.1} parent=1 // pred_fallthru
      _
    %v36 = vld [vmem:[#allocation2] sm:$0xff]
    %v37 = vld [vmem:[#allocation5] sm:$0xff]
    %v38 = vsub.f32 %v36, %v37
    %v39 = vmul.f32 %v38, %v38
    %v40 = vadd.f32 %v39, 0.0
    %41 = vst [vmem:[#allocation7] sm:$0xff] %v40
    // Predicated region
    $region18: #{tpu_custom_call.1} parent=1 // pred_check
      _
    $region19: #{tpu_custom_call.1} parent=1 // pred_check_branch
      %43 = sbr.rel (0) target = $region21
    $region20: #{tpu_custom_call.1} parent=1 // pred_region
      %s45 = ssub.s32 128, 128
      %46 = vsyncadd [#allocation4], %s45
      %s48 = sshll.u32 [#allocation7], 4
      %s49 = int_to_ptr.vmem [resolvable:$true] %s48
      %51 = dma.vmem_to_hbm [thread:$0]  %s49, 128, %s2, [#allocation4]
    $region21: #{tpu_custom_call.1} parent=1 // pred_fallthru
      _
    // Predicated region
    $region22: #{tpu_custom_call.1} parent=1 // pred_check
      _
    $region23: #{tpu_custom_call.1} parent=1 // pred_check_branch
      %53 = sbr.rel (0) target = $region25
    $region24: #{tpu_custom_call.1} parent=1 // pred_region
      %54 = dma.done [#allocation4], 128
    $region25: #{tpu_custom_call.1} parent=1 // pred_fallthru
      _
    %55 = vsyncpa [#allocation3], 1
    %56 = vsyncpa [#allocation6], 1
    %57 = vsyncpa [#allocation4], 1

</llo_original>
